<compile_context>
chip_gen: v6e
topology: v6e:2x2x1
jax: 0.10.0
libtpu: 0.0.40
codegen_flags: <defaults>
</compile_context>

<pallas_src>
import jax
import jax.numpy as jnp
from jax.experimental import pallas as pl
from jax.experimental.pallas import tpu as pltpu


def _round_up(x, m):
    return ((x + m - 1) // m) * m


def _default_pack():
    """Items packed per sublane row: 4 on 256-wide MXU chips, else 2."""
    try:
        kind = jax.devices()[0].device_kind.lower()
    except Exception:
        kind = ""
    return 4 if ("v6" in kind or "v7" in kind) else 2


def _build_ncf_kernel(n_layers, pack, h_last, use_roll_reduce):
    """Kernel over one (rows, pack*E) packed item tile."""

    def kernel(*refs):
        # ref order:
        #   items, (W_packed, b_packed) * n_layers, wf, bf, out
        item_ref = refs[0]
        layer_refs = refs[1:1 + 2 * n_layers]
        wf_ref = refs[1 + 2 * n_layers]
        bf_ref = refs[2 + 2 * n_layers]
        out_ref = refs[-1]

        h = item_ref[...]                                   # (R, pack*E)
        for li in range(n_layers):
            w_ref = layer_refs[2 * li]
            b_ref = layer_refs[2 * li + 1]
            # Cast LHS to the weight dtype (bf16 when use_bf16) for the MXU;
            # accumulate and do bias/ReLU in f32.
            h = jnp.dot(h.astype(w_ref.dtype), w_ref[...],
                        preferred_element_type=jnp.float32)
            h = jnp.maximum(h + b_ref[...], 0.0)            # (R, pack*h_i) f32

        if use_roll_reduce:
            # Last hidden layer is column-interleaved: item-slot p owns lanes
            # == p (mod pack).  Segmented sum over each stride-`pack` lane
            # class via a log2(h_last) roll+add tree (XLU+VPU, MXU untouched);
            # the p-th logit then sits at lane p.
            g = h * wf_ref[...]                             # (R, pack*h_last)
            total = pack * h_last
            shift = pack
            while shift < total:
                g = g + pltpu.roll(g, shift=shift, axis=-1)
                shift *= 2
            logits = g[:, :pack] + bf_ref[...]              # (R, pack)
        else:
            # Fallback: one small block-diagonal matmul (K=pack*h_last, N=pack).
            logits = jnp.dot(h, wf_ref[...],
                             preferred_element_type=jnp.float32) + bf_ref[...]

        # Exact sigmoid (no approx reciprocal -> stays inside [0, 1]).
        out_ref[...] = 1.0 / (1.0 + jnp.exp(-logits))

    return kernel


def ncf_forward(user_embedding, item_embeddings, params, *, tile_items=8192,
                use_bf16=True, pack=None):
    """NCF forward pass with a packed, tiled Pallas kernel.

    user_embedding : (E,) float32
    item_embeddings: (N, E) float32 (or bf16; streamed as-is, cast in-kernel)
    params         : dict with keys
        'w1' : (2E, h0)      'b1' : (1, h0)
        'fc' : list of (W: (h_i, h_{i+1}), b: (1, h_{i+1}))
        'wf' : (h_last, 1)   'bf' : (1, 1)
    Weights are stored (in, out), i.e. transposed relative to nn.Linear, so
    x @ W + b is identical to PyTorch's x @ W_pt.T + b.
    Returns (N, 1) float32 scores in [0, 1].
    """
    E = int(item_embeddings.shape[-1])
    N = int(item_embeddings.shape[0])
    mm_dtype = jnp.bfloat16 if use_bf16 else jnp.float32
    P = _default_pack() if pack is None else int(pack)

    # ---- one-time weight prep (tiny; independent of N) ----------------------
    w1 = params["w1"].astype(jnp.float32)
    w1u, w1i = w1[:E, :], w1[E:, :]
    user_row = user_embedding.reshape(1, E).astype(jnp.float32)
    fused_b1 = user_row @ w1u + params["b1"].astype(jnp.float32).reshape(1, -1)

    wf = params["wf"].reshape(-1).astype(jnp.float32)
    h_last = int(wf.shape[0])
    bf_tiled = jnp.tile(params["bf"].astype(jnp.float32).reshape(1, 1), (1, P))

    # Roll-reduce needs a power-of-two group size and lane-aligned total width.
    use_roll_reduce = (h_last & (h_last - 1)) == 0 and (P * h_last) % 128 == 0

    layers = [(w1i, fused_b1)]
    for (w, b) in params["fc"]:
        layers.append((w.astype(jnp.float32), b.astype(jnp.float32).reshape(1, -1)))

    eye = jnp.eye(P, dtype=jnp.float32)
    packed = []
    for li, (w, b) in enumerate(layers):
        in_d, out_d = int(w.shape[0]), int(w.shape[1])
        w_p = jnp.kron(eye, w)                              # (P*in, P*out) block-diag
        if li == len(layers) - 1 and use_roll_reduce:
            # Interleave output columns: [p, k] -> [k, p].
            w_p = w_p.reshape(P * in_d, P, out_d).transpose(0, 2, 1)
            w_p = w_p.reshape(P * in_d, P * out_d)
            b_p = jnp.repeat(b, P, axis=1)                  # b[k] at lane k*P+p
        else:
            b_p = jnp.tile(b, (1, P))                       # b[k] at lane p*out+k
        packed.append((w_p.astype(mm_dtype), b_p))

    if use_roll_reduce:
        wf_in = jnp.repeat(wf.reshape(1, h_last), P, axis=1)   # (1, P*h_last)
    else:
        wf_in = jnp.kron(eye, wf.reshape(h_last, 1))           # (P*h_last, P)

    # ---- row-block (tile) selection ------------------------------------------
    rows_total = pl.cdiv(N, P)                 # packed rows needed for N items
    rows_desired = max(8, (max(tile_items, 8 * P) // P) // 8 * 8)
    if rows_total <= 8:
        rows_block = rows_total
    else:
        rows_block = min(rows_desired, (rows_total // 8) * 8)
        # Keep >= 2 grid steps when possible so v7x's two TensorCores both work.
        if pl.cdiv(rows_total, rows_block) < 2:
            half = _round_up((rows_total + 1) // 2, 8)
            rows_block = max(8, min(rows_block, half))

    # ---- VMEM budget ----------------------------------------------------------
    weight_arrays = [a for wp_bp in packed for a in wp_bp] + [wf_in, bf_tiled]
    weight_bytes = sum(int(a.size) * a.dtype.itemsize for a in weight_arrays)
    max_width = max([P * E] + [int(wp.shape[1]) for wp, _ in packed])
    item_isize = item_embeddings.dtype.itemsize

    def _vmem_estimate(rb):
        return (2 * rb * P * E * item_isize      # double-buffered item tiles
                + 2 * rb * 128 * 4               # double-buffered out tiles (lane-padded)
                + 2 * weight_bytes               # resident weights / biases
                + 4 * rb * max_width * 4)        # live f32 activations

    try:
        vmem_cap = int(pltpu.get_tpu_info().vmem_capacity_bytes)
    except Exception:
        vmem_cap = 64 * 2**20                    # v7x per-core VMEM: safe floor
    budget = max(vmem_cap // 2, 16 * 2**20)
    while rows_block > 8 and _vmem_estimate(rows_block) > budget:
        rows_block = max(8, (rows_block // 2 // 8) * 8)

    grid_steps = int(pl.cdiv(rows_total, rows_block))
    if rows_total > 8:
        # Balance the last block (reduces tail padding); never increases steps.
        rows_block = _round_up(pl.cdiv(rows_total, grid_steps), 8)
        grid_steps = int(pl.cdiv(rows_total, rows_block))

    vmem_limit = int(min(max(vmem_cap - 16 * 2**20, 16 * 2**20),
                         max(2 * _vmem_estimate(rows_block), 16 * 2**20)))

    # ---- pack items: (N, E) -> (rows_padded, P*E) -----------------------------
    rows_padded = grid_steps * rows_block
    n_padded = rows_padded * P
    items = item_embeddings
    if n_padded != N:
        # Only happens when N is not already tile-aligned (one small copy);
        # production callers should pass N as a multiple of P*rows_block.
        items = jnp.pad(items, ((0, n_padded - N), (0, 0)))
    items = items.reshape(rows_padded, P * E)

    # ---- pallas_call -----------------------------------------------------------
    kernel_inputs = [items]
    in_specs = [pl.BlockSpec((rows_block, P * E), lambda i: (i, 0))]
    for w_p, b_p in packed:
        kernel_inputs += [w_p, b_p]
        in_specs += [pl.BlockSpec(w_p.shape, lambda i: (0, 0)),
                     pl.BlockSpec(b_p.shape, lambda i: (0, 0))]
    kernel_inputs += [wf_in, bf_tiled]
    in_specs += [pl.BlockSpec(wf_in.shape, lambda i: (0, 0)),
                 pl.BlockSpec(bf_tiled.shape, lambda i: (0, 0))]

    kernel = _build_ncf_kernel(len(layers), P, h_last, use_roll_reduce)

    out = pl.pallas_call(
        kernel,
        out_shape=jax.ShapeDtypeStruct((rows_padded, P), jnp.float32),
        grid=(grid_steps,),
        in_specs=in_specs,
        out_specs=pl.BlockSpec((rows_block, P), lambda i: (i, 0)),
        compiler_params=pltpu.CompilerParams(
            dimension_semantics=("parallel",),   # megacore sharding on v7x
            vmem_limit_bytes=vmem_limit,
        ),
    )(*kernel_inputs)

    # Packed (rows, P) -> (N, 1); row-major flatten restores item order.
    return out.reshape(-1, 1)[:N]


def init_params(key, embedding_size, hidden_sizes):
    """Deterministic parameter init; weights stored as (in, out)."""
    params = {}
    keys = jax.random.split(key, 2 * (len(hidden_sizes) + 1))
    ki = iter(range(len(keys)))

    def linear(k_w, k_b, fan_in, fan_out):
        bound = 1.0 / jnp.sqrt(fan_in)
        w = jax.random.uniform(k_w, (fan_in, fan_out), jnp.float32, -bound, bound)
        b = jax.random.uniform(k_b, (1, fan_out), jnp.float32, -bound, bound)
        return w, b

    params["w1"], params["b1"] = linear(keys[next(ki)], keys[next(ki)],
                                        embedding_size * 2, hidden_sizes[0])
    params["fc"] = []
    for i in range(len(hidden_sizes) - 1):
        w, b = linear(keys[next(ki)], keys[next(ki)],
                      hidden_sizes[i], hidden_sizes[i + 1])
        params["fc"].append((w, b))
    params["wf"], params["bf"] = linear(keys[next(ki)], keys[next(ki)],
                                        hidden_sizes[-1], 1)
    return params


def ncf_reference(user_embedding, item_embeddings, params):
    """Pure-JAX f32 reference (mirrors the PyTorch forward)."""
    N = item_embeddings.shape[0]
    x = jnp.concatenate(
        [jnp.broadcast_to(user_embedding[None, :], (N, user_embedding.shape[-1])),
         item_embeddings], axis=1)
    h = jax.nn.relu(x @ params["w1"] + params["b1"])
    for (w, b) in params["fc"]:
        h = jax.nn.relu(h @ w + b)
    return jax.nn.sigmoid(h @ params["wf"] + params["bf"])


if __name__ == "__main__":
    embedding_size = 32
    hidden_sizes = (64, 32)
    num_items = 100

    key = jax.random.PRNGKey(0)
    k_params, k_user, k_items = jax.random.split(key, 3)

    params = init_params(k_params, embedding_size, hidden_sizes)
    user_embedding = jax.random.normal(k_user, (embedding_size,), jnp.float32)
    item_embeddings = jax.random.normal(k_items, (num_items, embedding_size),
                                        jnp.float32)

    ref = ncf_reference(user_embedding, item_embeddings, params)

    # Small tiles: exercises the multi-step grid and tail-padding path.
    out_bf16 = jax.block_until_ready(
        ncf_forward(user_embedding, item_embeddings, params, tile_items=64))
    # Default (large) tiles with the f32 matmul path.
    out_f32 = jax.block_until_ready(
        ncf_forward(user_embedding, item_embeddings, params, use_bf16=False))

    assert out_bf16.shape == (num_items, 1)
    assert out_f32.shape == (num_items, 1)
    for name, out in (("bf16", out_bf16), ("f32", out_f32)):
        err = float(jnp.max(jnp.abs(out - ref)))
        assert jnp.allclose(out, ref, atol=2e-2, rtol=2e-2), \
            f"{name}: mismatch vs reference, max abs err {err}"

    print("KERNEL_OK")
</pallas_src>

<mosaic_0001>
module attributes {stable_mosaic.version = 11 : i64} {
  func.func @kernel(%arg0: i32, %arg1: memref<32x64xf32, #tpu.memory_space<vmem>>, %arg2: memref<64x128xbf16, #tpu.memory_space<vmem>>, %arg3: memref<1x128xf32, #tpu.memory_space<vmem>>, %arg4: memref<128x64xbf16, #tpu.memory_space<vmem>>, %arg5: memref<1x64xf32, #tpu.memory_space<vmem>>, %arg6: memref<64x2xf32, #tpu.memory_space<vmem>>, %arg7: memref<1x2xf32, #tpu.memory_space<vmem>>, %arg8: memref<32x2xf32, #tpu.memory_space<vmem>>) attributes {dimension_semantics = [#tpu.dimension_semantics<parallel>], iteration_bounds = array<i64: 2>, scalar_prefetch = 0 : i64, scratch_operands = 0 : i64, tpu.core_type = #tpu.core_type<tc>, window_params = [{transform_indices = @transform_0, window_bounds = array<i64: 32, 64>}, {pipeline_mode = #tpu.pipeline_mode<synchronous>, transform_indices = @transform_1, window_bounds = array<i64: 64, 128>}, {pipeline_mode = #tpu.pipeline_mode<synchronous>, transform_indices = @transform_2, window_bounds = array<i64: 1, 128>}, {pipeline_mode = #tpu.pipeline_mode<synchronous>, transform_indices = @transform_3, window_bounds = array<i64: 128, 64>}, {pipeline_mode = #tpu.pipeline_mode<synchronous>, transform_indices = @transform_4, window_bounds = array<i64: 1, 64>}, {pipeline_mode = #tpu.pipeline_mode<synchronous>, transform_indices = @transform_5, window_bounds = array<i64: 64, 2>}, {pipeline_mode = #tpu.pipeline_mode<synchronous>, transform_indices = @transform_6, window_bounds = array<i64: 1, 2>}, {transform_indices = @transform_7, window_bounds = array<i64: 32, 2>}]} {
    %c0 = arith.constant 0 : index
    %c0_0 = arith.constant 0 : index
    %0 = vector.load %arg1[%c0, %c0_0] : memref<32x64xf32, #tpu.memory_space<vmem>>, vector<32x64xf32>
    %1 = arith.truncf %0 : vector<32x64xf32> to vector<32x64xbf16>
    %c0_1 = arith.constant 0 : index
    %c0_2 = arith.constant 0 : index
    %2 = vector.load %arg2[%c0_1, %c0_2] : memref<64x128xbf16, #tpu.memory_space<vmem>>, vector<64x128xbf16>
    %cst = arith.constant dense<0.000000e+00> : vector<32x128xf32>
    %3 = tpu.matmul %1, %2, %cst {dimension_numbers = #tpu.dot_dimension_numbers<[1], [0], [0], [1], [0, 0, 1, 1], [], []>} : vector<32x64xbf16>, vector<64x128xbf16>, vector<32x128xf32> -> vector<32x128xf32>
    %c0_3 = arith.constant 0 : index
    %c0_4 = arith.constant 0 : index
    %4 = vector.load %arg3[%c0_3, %c0_4] : memref<1x128xf32, #tpu.memory_space<vmem>>, vector<1x128xf32>
    %5 = vector.broadcast %4 : vector<1x128xf32> to vector<32x128xf32>
    %6 = arith.addf %3, %5 : vector<32x128xf32>
    %cst_5 = arith.constant 0.000000e+00 : f32
    %7 = vector.broadcast %cst_5 : f32 to vector<32x128xf32>
    %8 = arith.maximumf %6, %7 : vector<32x128xf32>
    %9 = arith.truncf %8 : vector<32x128xf32> to vector<32x128xbf16>
    %c0_6 = arith.constant 0 : index
    %c0_7 = arith.constant 0 : index
    %10 = vector.load %arg4[%c0_6, %c0_7] : memref<128x64xbf16, #tpu.memory_space<vmem>>, vector<128x64xbf16>
    %cst_8 = arith.constant dense<0.000000e+00> : vector<32x64xf32>
    %11 = tpu.matmul %9, %10, %cst_8 {dimension_numbers = #tpu.dot_dimension_numbers<[1], [0], [0], [1], [0, 0, 1, 1], [], []>} : vector<32x128xbf16>, vector<128x64xbf16>, vector<32x64xf32> -> vector<32x64xf32>
    %c0_9 = arith.constant 0 : index
    %c0_10 = arith.constant 0 : index
    %12 = vector.load %arg5[%c0_9, %c0_10] : memref<1x64xf32, #tpu.memory_space<vmem>>, vector<1x64xf32>
    %13 = vector.broadcast %12 : vector<1x64xf32> to vector<32x64xf32>
    %14 = arith.addf %11, %13 : vector<32x64xf32>
    %cst_11 = arith.constant 0.000000e+00 : f32
    %15 = vector.broadcast %cst_11 : f32 to vector<32x64xf32>
    %16 = arith.maximumf %14, %15 : vector<32x64xf32>
    %c0_12 = arith.constant 0 : index
    %c0_13 = arith.constant 0 : index
    %17 = vector.load %arg6[%c0_12, %c0_13] : memref<64x2xf32, #tpu.memory_space<vmem>>, vector<64x2xf32>
    %cst_14 = arith.constant dense<0.000000e+00> : vector<32x2xf32>
    %18 = tpu.matmul %16, %17, %cst_14 {dimension_numbers = #tpu.dot_dimension_numbers<[1], [0], [0], [1], [0, 0, 1, 1], [], []>} : vector<32x64xf32>, vector<64x2xf32>, vector<32x2xf32> -> vector<32x2xf32>
    %c0_15 = arith.constant 0 : index
    %c0_16 = arith.constant 0 : index
    %19 = vector.load %arg7[%c0_15, %c0_16] : memref<1x2xf32, #tpu.memory_space<vmem>>, vector<1x2xf32>
    %20 = vector.broadcast %19 : vector<1x2xf32> to vector<32x2xf32>
    %21 = arith.addf %18, %20 : vector<32x2xf32>
    %cst_17 = arith.constant 0.000000e+00 : f32
    %22 = vector.broadcast %cst_17 : f32 to vector<32x2xf32>
    %23 = arith.subf %22, %21 : vector<32x2xf32>
    %24 = math.exp %23 : vector<32x2xf32>
    %cst_18 = arith.constant 1.000000e+00 : f32
    %25 = vector.broadcast %cst_18 : f32 to vector<32x2xf32>
    %26 = arith.addf %25, %24 : vector<32x2xf32>
    %cst_19 = arith.constant 1.000000e+00 : f32
    %27 = vector.broadcast %cst_19 : f32 to vector<32x2xf32>
    %28 = arith.divf %27, %26 : vector<32x2xf32>
    %c0_20 = arith.constant 0 : index
    %c0_21 = arith.constant 0 : index
    %29 = vector.load %arg8[%c0_20, %c0_21] : memref<32x2xf32, #tpu.memory_space<vmem>>, vector<32x2xf32>
    tpu.vector_store %arg8[%c0_20, %c0_21], %28 {strides = array<i32>} : memref<32x2xf32, #tpu.memory_space<vmem>>, vector<32x2xf32>,
    return
  }
  func.func @transform_0(%arg0: i32) -> (i32, i32) {
    %c0_i32 = arith.constant 0 : i32
    %c0_i32_0 = arith.constant 0 : i32
    return %arg0, %c0_i32 : i32, i32
  }
  func.func @transform_1(%arg0: i32) -> (i32, i32) {
    %c0_i32 = arith.constant 0 : i32
    %c0_i32_0 = arith.constant 0 : i32
    %c0_i32_1 = arith.constant 0 : i32
    return %c0_i32, %c0_i32_0 : i32, i32
  }
  func.func @transform_2(%arg0: i32) -> (i32, i32) {
    %c0_i32 = arith.constant 0 : i32
    %c0_i32_0 = arith.constant 0 : i32
    %c0_i32_1 = arith.constant 0 : i32
    return %c0_i32, %c0_i32_0 : i32, i32
  }
  func.func @transform_3(%arg0: i32) -> (i32, i32) {
    %c0_i32 = arith.constant 0 : i32
    %c0_i32_0 = arith.constant 0 : i32
    %c0_i32_1 = arith.constant 0 : i32
    return %c0_i32, %c0_i32_0 : i32, i32
  }
  func.func @transform_4(%arg0: i32) -> (i32, i32) {
    %c0_i32 = arith.constant 0 : i32
    %c0_i32_0 = arith.constant 0 : i32
    %c0_i32_1 = arith.constant 0 : i32
    return %c0_i32, %c0_i32_0 : i32, i32
  }
  func.func @transform_5(%arg0: i32) -> (i32, i32) {
    %c0_i32 = arith.constant 0 : i32
    %c0_i32_0 = arith.constant 0 : i32
    %c0_i32_1 = arith.constant 0 : i32
    return %c0_i32, %c0_i32_0 : i32, i32
  }
  func.func @transform_6(%arg0: i32) -> (i32, i32) {
    %c0_i32 = arith.constant 0 : i32
    %c0_i32_0 = arith.constant 0 : i32
    %c0_i32_1 = arith.constant 0 : i32
    return %c0_i32, %c0_i32_0 : i32, i32
  }
  func.func @transform_7(%arg0: i32) -> (i32, i32) {
    %c0_i32 = arith.constant 0 : i32
    %c0_i32_0 = arith.constant 0 : i32
    return %arg0, %c0_i32 : i32, i32
  }
}

</mosaic_0001>

<llo_original>
// kernel: tpu_custom_call.1
$region0: #{tpu_custom_call.1}
  #allocation0 [shape = 'u32[]', space=smem, size = 0x4, offset = 0x4, fixed_abs, tag = 'smem constant byte address 0x4 - core index']
  #allocation1 [shape = 'u32[144,128]{1,0:T(1,128)}', space=vmem, size = 0x12000, scoped, tag = 'internal scratch']
  %s0 = inlined_call_operand.vmem [shape: f32[64,64], index: 0, kind: input, shape index: {}]
  %s1 = inlined_call_operand.vmem [shape: bf16[64,128], index: 1, kind: input, shape index: {}]
  %s2 = inlined_call_operand.vmem [shape: f32[1,128], index: 2, kind: input, shape index: {}]
  %s3 = inlined_call_operand.vmem [shape: bf16[128,64], index: 3, kind: input, shape index: {}]
  %s4 = inlined_call_operand.vmem [shape: f32[1,64], index: 4, kind: input, shape index: {}]
  %s5 = inlined_call_operand.vmem [shape: f32[64,2], index: 5, kind: input, shape index: {}]
  %s6 = inlined_call_operand.vmem [shape: f32[1,2], index: 6, kind: input, shape index: {}]
  %s7 = inlined_call_operand.vmem [shape: f32[64,2], index: 7, kind: output, shape index: {}]
  %s8 = sld [smem:[#allocation0]]
  $region61: #{tpu_custom_call.1} parent=0
    _
  %s10 = ssub.s32 1, %s8
  %s11 = scalar_select 0, %s10, %s8
  loop: start=0, step=1, limit=4
  $region2: #{tpu_custom_call.1} parent=0 // loop_pre_header
    _
  $region3: #{tpu_custom_call.1} parent=0 // loop_header
    %s13 = sphi 0, %s17
    %p14 = scmp.ge.s32.totalorder %s13, 4
    %s23 = sphi 0, %s25
    %s26 = sphi 0, %s23
    %s27 = sphi 0, %s26
    %s43 = sphi 0, %s27
    %s47 = sphi 0, %s47
    %s49 = sphi 0, %s47
    %s50 = sphi 0, %s49
    %s64 = sphi 0, %s50
    %s68 = sphi 0, %s68
    %s70 = sphi 0, %s68
    %s71 = sphi 0, %s70
    %s85 = sphi 0, %s71
    %s89 = sphi 0, %s89
    %s91 = sphi 0, %s89
    %s92 = sphi 0, %s91
    %s106 = sphi 0, %s92
    %s110 = sphi 0, %s110
    %s112 = sphi 0, %s110
    %s113 = sphi 0, %s112
    %s127 = sphi 0, %s113
    %s131 = sphi 0, %s131
    %s133 = sphi 0, %s131
    %s134 = sphi 0, %s133
    %s148 = sphi 0, %s134
    %s152 = sphi 0, %s152
    %s154 = sphi 0, %s152
    %s155 = sphi 0, %s154
    %s169 = sphi 0, %s155
    %s175 = sphi 0, %s177
    %s178 = sphi 0, %s175
    %s179 = sphi 0, %s178
    %s195 = sphi 0, %s179
  $region4: #{tpu_custom_call.1} parent=0 // loop_header_branch
    %16 = sbr.rel (%p14) target = $region8
  $region5: #{tpu_custom_call.1} parent=0 // loop_body
    %s18 = ssub.s32 %s13, 1
    %s19 = ssub.s32 %s13, 2
    %s20 = sadd.s32 %s13, 1
    %s21 = ssub.s32 %s13, %s20
    %p22 = scmp.eq.s32.totalorder %s21, 0
    %s24 = sadd.s32 %s23, 1
    %s25 = scalar_select %p22, %s23, %s24
    %p28 = pneg %p22
    %p29 = scmp.eq.s32.totalorder %s13, 1
    %p30 = por %p28, %p29
    %p31 = scmp.ne.s32.totalorder %s23, %s26
    %p32 = scmp.eq.s32.totalorder %s13, 0
    %p33 = por %p31, %p32
    %p34 = scmp.ne.s32.totalorder %s23, %s26
    %p35 = scmp.eq.s32.totalorder %s18, 1
    %p36 = por %p34, %p35
    %p37 = scmp.ne.s32.totalorder %s26, %s27
    %p38 = scmp.eq.s32.totalorder %s18, 0
    %p39 = por %p37, %p38
    %p40 = scmp.ne.s32.totalorder %s26, %s27
    %p41 = scmp.eq.s32.totalorder %s19, 1
    %p42 = por %p40, %p41
    %p44 = scmp.ne.s32.totalorder %s27, %s43
    %p45 = scmp.eq.s32.totalorder %s19, 0
    %p46 = por %p44, %p45
    %s48 = sadd.s32 %s47, 1
    %p51 = scmp.eq.s32.totalorder %s13, 1
    %p52 = scmp.ne.s32.totalorder %s47, %s49
    %p53 = scmp.eq.s32.totalorder %s13, 0
    %p54 = por %p52, %p53
    %p55 = scmp.ne.s32.totalorder %s47, %s49
    %p56 = scmp.eq.s32.totalorder %s18, 1
    %p57 = por %p55, %p56
    %p58 = scmp.ne.s32.totalorder %s49, %s50
    %p59 = scmp.eq.s32.totalorder %s18, 0
    %p60 = por %p58, %p59
    %p61 = scmp.ne.s32.totalorder %s49, %s50
    %p62 = scmp.eq.s32.totalorder %s19, 1
    %p63 = por %p61, %p62
    %p65 = scmp.ne.s32.totalorder %s50, %s64
    %p66 = scmp.eq.s32.totalorder %s19, 0
    %p67 = por %p65, %p66
    %s69 = sadd.s32 %s68, 1
    %p72 = scmp.eq.s32.totalorder %s13, 1
    %p73 = scmp.ne.s32.totalorder %s68, %s70
    %p74 = scmp.eq.s32.totalorder %s13, 0
    %p75 = por %p73, %p74
    %p76 = scmp.ne.s32.totalorder %s68, %s70
    %p77 = scmp.eq.s32.totalorder %s18, 1
    %p78 = por %p76, %p77
    %p79 = scmp.ne.s32.totalorder %s70, %s71
    %p80 = scmp.eq.s32.totalorder %s18, 0
    %p81 = por %p79, %p80
    %p82 = scmp.ne.s32.totalorder %s70, %s71
    %p83 = scmp.eq.s32.totalorder %s19, 1
    %p84 = por %p82, %p83
    %p86 = scmp.ne.s32.totalorder %s71, %s85
    %p87 = scmp.eq.s32.totalorder %s19, 0
    %p88 = por %p86, %p87
    %s90 = sadd.s32 %s89, 1
    %p93 = scmp.eq.s32.totalorder %s13, 1
    %p94 = scmp.ne.s32.totalorder %s89, %s91
    %p95 = scmp.eq.s32.totalorder %s13, 0
    %p96 = por %p94, %p95
    %p97 = scmp.ne.s32.totalorder %s89, %s91
    %p98 = scmp.eq.s32.totalorder %s18, 1
    %p99 = por %p97, %p98
    %p100 = scmp.ne.s32.totalorder %s91, %s92
    %p101 = scmp.eq.s32.totalorder %s18, 0
    %p102 = por %p100, %p101
    %p103 = scmp.ne.s32.totalorder %s91, %s92
    %p104 = scmp.eq.s32.totalorder %s19, 1
    %p105 = por %p103, %p104
    %p107 = scmp.ne.s32.totalorder %s92, %s106
    %p108 = scmp.eq.s32.totalorder %s19, 0
    %p109 = por %p107, %p108
    %s111 = sadd.s32 %s110, 1
    %p114 = scmp.eq.s32.totalorder %s13, 1
    %p115 = scmp.ne.s32.totalorder %s110, %s112
    %p116 = scmp.eq.s32.totalorder %s13, 0
    %p117 = por %p115, %p116
    %p118 = scmp.ne.s32.totalorder %s110, %s112
    %p119 = scmp.eq.s32.totalorder %s18, 1
    %p120 = por %p118, %p119
    %p121 = scmp.ne.s32.totalorder %s112, %s113
    %p122 = scmp.eq.s32.totalorder %s18, 0
    %p123 = por %p121, %p122
    %p124 = scmp.ne.s32.totalorder %s112, %s113
    %p125 = scmp.eq.s32.totalorder %s19, 1
    %p126 = por %p124, %p125
    %p128 = scmp.ne.s32.totalorder %s113, %s127
    %p129 = scmp.eq.s32.totalorder %s19, 0
    %p130 = por %p128, %p129
    %s132 = sadd.s32 %s131, 1
    %p135 = scmp.eq.s32.totalorder %s13, 1
    %p136 = scmp.ne.s32.totalorder %s131, %s133
    %p137 = scmp.eq.s32.totalorder %s13, 0
    %p138 = por %p136, %p137
    %p139 = scmp.ne.s32.totalorder %s131, %s133
    %p140 = scmp.eq.s32.totalorder %s18, 1
    %p141 = por %p139, %p140
    %p142 = scmp.ne.s32.totalorder %s133, %s134
    %p143 = scmp.eq.s32.totalorder %s18, 0
    %p144 = por %p142, %p143
    %p145 = scmp.ne.s32.totalorder %s133, %s134
    %p146 = scmp.eq.s32.totalorder %s19, 1
    %p147 = por %p145, %p146
    %p149 = scmp.ne.s32.totalorder %s134, %s148
    %p150 = scmp.eq.s32.totalorder %s19, 0
    %p151 = por %p149, %p150
    %s153 = sadd.s32 %s152, 1
    %p156 = scmp.eq.s32.totalorder %s13, 1
    %p157 = scmp.ne.s32.totalorder %s152, %s154
    %p158 = scmp.eq.s32.totalorder %s13, 0
    %p159 = por %p157, %p158
    %p160 = scmp.ne.s32.totalorder %s152, %s154
    %p161 = scmp.eq.s32.totalorder %s18, 1
    %p162 = por %p160, %p161
    %p163 = scmp.ne.s32.totalorder %s154, %s155
    %p164 = scmp.eq.s32.totalorder %s18, 0
    %p165 = por %p163, %p164
    %p166 = scmp.ne.s32.totalorder %s154, %s155
    %p167 = scmp.eq.s32.totalorder %s19, 1
    %p168 = por %p166, %p167
    %p170 = scmp.ne.s32.totalorder %s155, %s169
    %p171 = scmp.eq.s32.totalorder %s19, 0
    %p172 = por %p170, %p171
    %s173 = ssub.s32 %s13, %s20
    %p174 = scmp.eq.s32.totalorder %s173, 0
    %s176 = sadd.s32 %s175, 1
    %s177 = scalar_select %p174, %s175, %s176
    %p180 = pneg %p174
    %p181 = scmp.eq.s32.totalorder %s13, 1
    %p182 = por %p180, %p181
    %p183 = scmp.ne.s32.totalorder %s175, %s178
    %p184 = scmp.eq.s32.totalorder %s13, 0
    %p185 = por %p183, %p184
    %p186 = scmp.ne.s32.totalorder %s175, %s178
    %p187 = scmp.eq.s32.totalorder %s18, 1
    %p188 = por %p186, %p187
    %p189 = scmp.ne.s32.totalorder %s178, %s179
    %p190 = scmp.eq.s32.totalorder %s18, 0
    %p191 = por %p189, %p190
    %p192 = scmp.ne.s32.totalorder %s178, %s179
    %p193 = scmp.eq.s32.totalorder %s19, 1
    %p194 = por %p192, %p193
    %p196 = scmp.ne.s32.totalorder %s179, %s195
    %p197 = scmp.eq.s32.totalorder %s19, 0
    %p198 = por %p196, %p197
    %p199 = scmp.le.s32.totalorder 1, %s13
    %p200 = scmp.lt.s32.totalorder %s13, 3
    %p201 = pnand %p199, %p200
    %p202 = pneg %p201
    // Predicated region
    $region9: #{tpu_custom_call.1} parent=5 // pred_check
      _
    $region10: #{tpu_custom_call.1} parent=5 // pred_check_branch
      %204 = sbr.rel (%p201) target = $region12
    $region11: #{tpu_custom_call.1} parent=5 // pred_region
      %s205 = ssub.s32 %s13, 1
      // Predicated region
      $region13: #{tpu_custom_call.1} parent=11 // pred_check
        %p206 = pneg %p60
      $region14: #{tpu_custom_call.1} parent=11 // pred_check_branch
        %208 = sbr.rel (%p206) target = $region16
      $region15: #{tpu_custom_call.1} parent=11 // pred_region
        _
      $region16: #{tpu_custom_call.1} parent=11 // pred_fallthru
        _
      // Predicated region
      $region17: #{tpu_custom_call.1} parent=11 // pred_check
        %p209 = pneg %p81
      $region18: #{tpu_custom_call.1} parent=11 // pred_check_branch
        %211 = sbr.rel (%p209) target = $region20
      $region19: #{tpu_custom_call.1} parent=11 // pred_region
        _
      $region20: #{tpu_custom_call.1} parent=11 // pred_fallthru
        _
      // Predicated region
      $region21: #{tpu_custom_call.1} parent=11 // pred_check
        %p212 = pneg %p102
      $region22: #{tpu_custom_call.1} parent=11 // pred_check_branch
        %214 = sbr.rel (%p212) target = $region24
      $region23: #{tpu_custom_call.1} parent=11 // pred_region
        _
      $region24: #{tpu_custom_call.1} parent=11 // pred_fallthru
        _
      // Predicated region
      $region25: #{tpu_custom_call.1} parent=11 // pred_check
        %p215 = pneg %p123
      $region26: #{tpu_custom_call.1} parent=11 // pred_check_branch
        %217 = sbr.rel (%p215) target = $region28
      $region27: #{tpu_custom_call.1} parent=11 // pred_region
        _
      $region28: #{tpu_custom_call.1} parent=11 // pred_fallthru
        _
      // Predicated region
      $region29: #{tpu_custom_call.1} parent=11 // pred_check
        %p218 = pneg %p144
      $region30: #{tpu_custom_call.1} parent=11 // pred_check_branch
        %220 = sbr.rel (%p218) target = $region32
      $region31: #{tpu_custom_call.1} parent=11 // pred_region
        _
      $region32: #{tpu_custom_call.1} parent=11 // pred_fallthru
        _
      // Predicated region
      $region33: #{tpu_custom_call.1} parent=11 // pred_check
        %p221 = pneg %p165
      $region34: #{tpu_custom_call.1} parent=11 // pred_check_branch
        %223 = sbr.rel (%p221) target = $region36
      $region35: #{tpu_custom_call.1} parent=11 // pred_region
        _
      $region36: #{tpu_custom_call.1} parent=11 // pred_fallthru
        _
    $region12: #{tpu_custom_call.1} parent=5 // pred_fallthru
      _
    %p224 = scmp.lt.s32.totalorder %s13, 2
    // Predicated region
    $region37: #{tpu_custom_call.1} parent=5 // pred_check
      %p225 = pneg %p224
    $region38: #{tpu_custom_call.1} parent=5 // pred_check_branch
      %227 = sbr.rel (%p225) target = $region40
    $region39: #{tpu_custom_call.1} parent=5 // pred_region
      // Predicated region
      $region41: #{tpu_custom_call.1} parent=39 // pred_check
        %p228 = pneg %p33
      $region42: #{tpu_custom_call.1} parent=39 // pred_check_branch
        %230 = sbr.rel (%p228) target = $region44
      $region43: #{tpu_custom_call.1} parent=39 // pred_region
        %s231 = smul.u32 4, %s13
        %p232 = scmp.lt.s32.totalorder %s231, 7
        %s233 = scalar_select %p232, %s231, 7
        %s234 = smul.addr %s233, 8
        %s235 = scalar_lea.vmem %s0, %s234
        %s236 = smul.u32 4, %s13
      $region44: #{tpu_custom_call.1} parent=39 // pred_fallthru
        _
    $region40: #{tpu_custom_call.1} parent=5 // pred_fallthru
      _
    %p237 = scmp.le.s32.totalorder 1, %s13
    %p238 = scmp.lt.s32.totalorder %s13, 3
    %p239 = pnand %p237, %p238
    %p240 = pneg %p239
    // Predicated region
    $region45: #{tpu_custom_call.1} parent=5 // pred_check
      _
    $region46: #{tpu_custom_call.1} parent=5 // pred_check_branch
      %242 = sbr.rel (%p239) target = $region48
    $region47: #{tpu_custom_call.1} parent=5 // pred_region
      %s243 = ssub.s32 %s13, 1
      %s244 = smul.u32 4, %s18
      %p245 = scmp.lt.s32.totalorder %s244, 7
      %s246 = scalar_select %p245, %s244, 7
      %s247 = smul.addr %s246, 8
      %s248 = scalar_lea.vmem %s0, %s247
      %p249 = pneg %p39
      %p250 = pneg %p36
      %p251 = pneg %p60
      %p252 = pneg %p57
      %p253 = pneg %p81
      %p254 = pneg %p78
      %p255 = pneg %p102
      %p256 = pneg %p99
      %p257 = pneg %p123
      %p258 = pneg %p120
      %p259 = pneg %p144
      %p260 = pneg %p141
      %p261 = pneg %p165
      %p262 = pneg %p162
      %p263 = pneg %p191
      %p264 = pneg %p188
      %s265 = smul.u32 4, %s18
      %p266 = scmp.lt.s32.totalorder %s265, 7
      %s267 = scalar_select %p266, %s265, 7
      %s268 = smul.addr %s267, 8
      %s269 = scalar_lea.vmem %s7, %s268
      %s270 = smul.u32 4, %s18
      %p271 = scmp.lt.s32.totalorder %s270, 7
      %s272 = scalar_select %p271, %s270, 7
      %s273 = smul.addr %s272, 8
      %s274 = scalar_lea.vmem %s0, %s273
      %s275 = smul.u32 4, %s18
      %s276 = smul.u32 4, %s18
      %p277 = scmp.lt.s32.totalorder %s276, 7
      %s278 = scalar_select %p277, %s276, 7
      %s279 = smul.addr %s278, 8
      %s280 = scalar_lea.vmem %s7, %s279
      %s281 = smul.u32 4, %s18
      %v283 = vld [vmem:[%s274] sm:$0xff]
      %v284 = vld [vmem:[%s274 + $0x8] sm:$0xff]
      %v285 = vld [vmem:[%s274 + $0x10] sm:$0xff]
      %v286 = vld [vmem:[%s274 + $0x18] sm:$0xff]
      %v287 = vpack.c.bf16 %v284, %v283
      %v288 = vpack.c.bf16 %v286, %v285
      %v289 = vld [vmem:[%s1] sm:$0xf]
      %v290 = vld [vmem:[%s1 + $0x4] sm:$0xf]
      %v291 = vld [vmem:[%s1 + $0x8] sm:$0xf]
      %v292 = vld [vmem:[%s1 + $0xc] sm:$0xf]
      %v293 = vld [vmem:[%s1 + $0x10] sm:$0xf]
      %v294 = vld [vmem:[%s1 + $0x14] sm:$0xf]
      %v295 = vld [vmem:[%s1 + $0x18] sm:$0xf]
      %v296 = vld [vmem:[%s1 + $0x1c] sm:$0xf]
      %v297 = vld [vmem:[%s2] sm:$0x1]
      %v299 = vlaneseq
      %v300 = vshrl.u32 %v299, 7
      %v301 = vsub.s32 0, %v300
      %v302 = vrot.slane %v297, %v301
      %v312 = vunpack.c.l.b16 %v289
      %v313 = vunpack.c.l.b16 %v290
      %v314 = vunpack.c.l.b16 %v291
      %v315 = vunpack.c.l.b16 %v292
      %v316 = vunpack.c.l.b16 %v293
      %v317 = vunpack.c.l.b16 %v294
      %v318 = vunpack.c.l.b16 %v295
      %v319 = vunpack.c.l.b16 %v296
      %v320 = vpack.c.b16 %v313, %v312
      %v321 = vpack.c.b16 %v315, %v314
      %v322 = vpack.c.b16 %v317, %v316
      %v323 = vpack.c.b16 %v319, %v318
      %vm328 = vcmask 523264
      %v330 = vsel %vm328, %v287, 0
      %v333 = vsel %vm328, %v288, 0
      %335 = vmatprep.subr.bf16.mxu0 0
      %336 = vmatpush1.bf16.msra.mxu0 0
      %337 = vmatprep.subr.bf16.mxu0 0
      %338 = vmatpush1.bf16.msra.mxu0 0
      %339 = vmatprep.subr.bf16.mxu0 0
      %340 = vmatpush1.bf16.msra.mxu0 0
      %341 = vmatprep.subr.bf16.mxu0 0
      %342 = vmatpush1.bf16.msra.mxu0 0
      %343 = vmatprep.subr.bf16.mxu0 0
      %344 = vmatpush1.bf16.msra.mxu0 %v323
      %345 = vmatprep.subr.bf16.mxu0 0
      %346 = vmatpush1.bf16.msra.mxu0 %v322
      %347 = vmatprep.subr.bf16.mxu0 0
      %348 = vmatpush1.bf16.msra.mxu0 %v321
      %349 = vmatprep.subr.bf16.mxu0 0
      %350 = vmatpush1.bf16.msra.mxu0 %v320
      %351 = vmatprep.subr.bf16.mxu0 0
      %352 = vmatpush2.bf16.msra.mxu0 0
      %353 = vmatprep.subr.bf16.mxu0 0
      %354 = vmatpush2.bf16.msra.mxu0 0
      %355 = vmatprep.subr.bf16.mxu0 0
      %356 = vmatpush2.bf16.msra.mxu0 0
      %357 = vmatprep.subr.bf16.mxu0 0
      %358 = vmatpush2.bf16.msra.mxu0 0
      %359 = vmatprep.subr.bf16.mxu0 0
      %360 = vmatpush2.bf16.msra.mxu0 0
      %361 = vmatprep.subr.bf16.mxu0 0
      %362 = vmatpush2.bf16.msra.mxu0 0
      %363 = vmatprep.subr.bf16.mxu0 0
      %364 = vmatpush2.bf16.msra.mxu0 0
      %365 = vmatprep.subr.bf16.mxu0 0
      %366 = vmatpush2.bf16.msra.mxu0 0
      %367 = vmatprep.mubr.bf16.mxu0 0
      %368 = vmatmul.mubr.bf16.gmra.mxu0 %v330
      %v369 = vpop.f32.mrf.mxu0
      %v370 = vadd.f32 %v302, %v369
      %v371 = vpop.f32.mrf.mxu0
      %v372 = vpop.f32.mrf.mxu0
      %v373 = vadd.f32 %v302, %v372
      %v374 = vpop.f32.mrf.mxu0
      %375 = vmatprep.mubr.bf16.mxu0 0
      %376 = vmatmul.mubr.bf16.gmra.mxu0 %v333
      %v377 = vpop.f32.mrf.mxu0
      %v378 = vadd.f32 %v302, %v377
      %v379 = vpop.f32.mrf.mxu0
      %v380 = vpop.f32.mrf.mxu0
      %v381 = vadd.f32 %v302, %v380
      %v382 = vpop.f32.mrf.mxu0
      %383 = vdwg.mxu0
      %v384 = vmax.f32 %v370, 0.0
      %v385 = vmax.f32 %v373, 0.0
      %v386 = vmax.f32 %v378, 0.0
      %v387 = vmax.f32 %v381, 0.0
      %v388 = vpack.c.bf16 %v385, %v384
      %v389 = vpack.c.bf16 %v387, %v386
      %v390 = vld [vmem:[%s3] sm:$0xf]
      %v391 = vld [vmem:[%s3 + $0x4] sm:$0xf]
      %v392 = vld [vmem:[%s3 + $0x8] sm:$0xf]
      %v393 = vld [vmem:[%s3 + $0xc] sm:$0xf]
      %v394 = vld [vmem:[%s3 + $0x10] sm:$0xf]
      %v395 = vld [vmem:[%s3 + $0x14] sm:$0xf]
      %v396 = vld [vmem:[%s3 + $0x18] sm:$0xf]
      %v397 = vld [vmem:[%s3 + $0x1c] sm:$0xf]
      %v398 = vld [vmem:[%s3 + $0x20] sm:$0xf]
      %v399 = vld [vmem:[%s3 + $0x24] sm:$0xf]
      %v400 = vld [vmem:[%s3 + $0x28] sm:$0xf]
      %v401 = vld [vmem:[%s3 + $0x2c] sm:$0xf]
      %v402 = vld [vmem:[%s3 + $0x30] sm:$0xf]
      %v403 = vld [vmem:[%s3 + $0x34] sm:$0xf]
      %v404 = vld [vmem:[%s3 + $0x38] sm:$0xf]
      %v405 = vld [vmem:[%s3 + $0x3c] sm:$0xf]
      %v406 = vld [vmem:[%s4] sm:$0x1]
      %v408 = vlaneseq
      %v409 = vshrl.u32 %v408, 7
      %v410 = vsub.s32 0, %v409
      %v411 = vrot.slane %v406, %v410
      %v429 = vunpack.c.l.b16 %v390
      %v430 = vunpack.c.l.b16 %v391
      %v431 = vunpack.c.l.b16 %v392
      %v432 = vunpack.c.l.b16 %v393
      %v433 = vunpack.c.l.b16 %v394
      %v434 = vunpack.c.l.b16 %v395
      %v435 = vunpack.c.l.b16 %v396
      %v436 = vunpack.c.l.b16 %v397
      %v437 = vunpack.c.l.b16 %v398
      %v438 = vunpack.c.l.b16 %v399
      %v439 = vunpack.c.l.b16 %v400
      %v440 = vunpack.c.l.b16 %v401
      %v441 = vunpack.c.l.b16 %v402
      %v442 = vunpack.c.l.b16 %v403
      %v443 = vunpack.c.l.b16 %v404
      %v444 = vunpack.c.l.b16 %v405
      %v445 = vpack.c.b16 %v430, %v429
      %v446 = vpack.c.b16 %v432, %v431
      %v447 = vpack.c.b16 %v434, %v433
      %v448 = vpack.c.b16 %v436, %v435
      %v449 = vpack.c.b16 %v438, %v437
      %v450 = vpack.c.b16 %v440, %v439
      %v451 = vpack.c.b16 %v442, %v441
      %v452 = vpack.c.b16 %v444, %v443
      %461 = vmatprep.subr.bf16.mxu0 0
      %462 = vmatpush1.bf16.msra.mxu0 %v452
      %463 = vmatprep.subr.bf16.mxu0 0
      %464 = vmatpush1.bf16.msra.mxu0 %v451
      %465 = vmatprep.subr.bf16.mxu0 0
      %466 = vmatpush1.bf16.msra.mxu0 %v450
      %467 = vmatprep.subr.bf16.mxu0 0
      %468 = vmatpush1.bf16.msra.mxu0 %v449
      %469 = vmatprep.subr.bf16.mxu0 0
      %470 = vmatpush1.bf16.msra.mxu0 %v448
      %471 = vmatprep.subr.bf16.mxu0 0
      %472 = vmatpush1.bf16.msra.mxu0 %v447
      %473 = vmatprep.subr.bf16.mxu0 0
      %474 = vmatpush1.bf16.msra.mxu0 %v446
      %475 = vmatprep.subr.bf16.mxu0 0
      %476 = vmatpush1.bf16.msra.mxu0 %v445
      %477 = vmatprep.subr.bf16.mxu0 0
      %478 = vmatpush2.bf16.msra.mxu0 0
      %479 = vmatprep.subr.bf16.mxu0 0
      %480 = vmatpush2.bf16.msra.mxu0 0
      %481 = vmatprep.subr.bf16.mxu0 0
      %482 = vmatpush2.bf16.msra.mxu0 0
      %483 = vmatprep.subr.bf16.mxu0 0
      %484 = vmatpush2.bf16.msra.mxu0 0
      %485 = vmatprep.subr.bf16.mxu0 0
      %486 = vmatpush2.bf16.msra.mxu0 0
      %487 = vmatprep.subr.bf16.mxu0 0
      %488 = vmatpush2.bf16.msra.mxu0 0
      %489 = vmatprep.subr.bf16.mxu0 0
      %490 = vmatpush2.bf16.msra.mxu0 0
      %491 = vmatprep.subr.bf16.mxu0 0
      %492 = vmatpush2.bf16.msra.mxu0 0
      %493 = vmatprep.mubr.bf16.mxu0 0
      %494 = vmatmul.mubr.bf16.gmra.mxu0 %v388
      %v495 = vpop.f32.mrf.mxu0
      %v496 = vadd.f32 %v411, %v495
      %v497 = vpop.f32.mrf.mxu0
      %v498 = vpop.f32.mrf.mxu0
      %v499 = vadd.f32 %v411, %v498
      %v500 = vpop.f32.mrf.mxu0
      %501 = vmatprep.mubr.bf16.mxu0 0
      %502 = vmatmul.mubr.bf16.gmra.mxu0 %v389
      %v503 = vpop.f32.mrf.mxu0
      %v504 = vadd.f32 %v411, %v503
      %v505 = vpop.f32.mrf.mxu0
      %v506 = vpop.f32.mrf.mxu0
      %v507 = vadd.f32 %v411, %v506
      %v508 = vpop.f32.mrf.mxu0
      %509 = vdwg.mxu0
      %v510 = vmax.f32 %v496, 0.0
      %v511 = vmax.f32 %v499, 0.0
      %v512 = vmax.f32 %v504, 0.0
      %v513 = vmax.f32 %v507, 0.0
      %v514 = vld [vmem:[%s5] sm:$0xff]
      %v515 = vld [vmem:[%s5 + $0x8] sm:$0xff]
      %v516 = vld [vmem:[%s5 + $0x10] sm:$0xff]
      %v517 = vld [vmem:[%s5 + $0x18] sm:$0xff]
      %v518 = vld [vmem:[%s5 + $0x20] sm:$0xff]
      %v519 = vld [vmem:[%s5 + $0x28] sm:$0xff]
      %v520 = vld [vmem:[%s5 + $0x30] sm:$0xff]
      %v521 = vld [vmem:[%s5 + $0x38] sm:$0xff]
      %v522 = vld [vmem:[%s6] sm:$0x1]
      %v524 = vlaneseq
      %v525 = vshrl.u32 %v524, 7
      %v526 = vsub.s32 0, %v525
      %v527 = vrot.slane %v522, %v526
      %v530 = vsel %vm328, %v510, 0
      %v533 = vsel %vm328, %v511, 0
      %v536 = vsel %vm328, %v512, 0
      %v539 = vsel %vm328, %v513, 0
      %541 = vmatprep.subr.mxu0 0.0
      %542 = vmatpush1.msra.mxu0 0.0
      %543 = vmatprep.subr.mxu0 0.0
      %544 = vmatpush1.msra.mxu0 0.0
      %545 = vmatprep.subr.mxu0 0.0
      %546 = vmatpush1.msra.mxu0 0.0
      %547 = vmatprep.subr.mxu0 0.0
      %548 = vmatpush1.msra.mxu0 0.0
      %549 = vmatprep.subr.mxu0 0.0
      %550 = vmatpush1.msra.mxu0 0.0
      %551 = vmatprep.subr.mxu0 0.0
      %552 = vmatpush1.msra.mxu0 0.0
      %553 = vmatprep.subr.mxu0 0.0
      %554 = vmatpush1.msra.mxu0 0.0
      %555 = vmatprep.subr.mxu0 0.0
      %556 = vmatpush1.msra.mxu0 0.0
      %557 = vmatprep.subr.mxu0 0.0
      %558 = vmatpush1.msra.mxu0 %v521
      %559 = vmatprep.subr.mxu0 0.0
      %560 = vmatpush1.msra.mxu0 %v520
      %561 = vmatprep.subr.mxu0 0.0
      %562 = vmatpush1.msra.mxu0 %v519
      %563 = vmatprep.subr.mxu0 0.0
      %564 = vmatpush1.msra.mxu0 %v518
      %565 = vmatprep.subr.mxu0 0.0
      %566 = vmatpush1.msra.mxu0 %v517
      %567 = vmatprep.subr.mxu0 0.0
      %568 = vmatpush1.msra.mxu0 %v516
      %569 = vmatprep.subr.mxu0 0.0
      %570 = vmatpush1.msra.mxu0 %v515
      %571 = vmatprep.subr.mxu0 0.0
      %572 = vmatpush1.msra.mxu0 %v514
      %573 = vmatprep.subr.mxu0 0.0
      %574 = vmatpush2.msra.mxu0 0.0
      %575 = vmatprep.subr.mxu0 0.0
      %576 = vmatpush2.msra.mxu0 0.0
      %577 = vmatprep.subr.mxu0 0.0
      %578 = vmatpush2.msra.mxu0 0.0
      %579 = vmatprep.subr.mxu0 0.0
      %580 = vmatpush2.msra.mxu0 0.0
      %581 = vmatprep.subr.mxu0 0.0
      %582 = vmatpush2.msra.mxu0 0.0
      %583 = vmatprep.subr.mxu0 0.0
      %584 = vmatpush2.msra.mxu0 0.0
      %585 = vmatprep.subr.mxu0 0.0
      %586 = vmatpush2.msra.mxu0 0.0
      %587 = vmatprep.subr.mxu0 0.0
      %588 = vmatpush2.msra.mxu0 0.0
      %589 = vmatprep.subr.mxu0 0.0
      %590 = vmatpush2.msra.mxu0 0.0
      %591 = vmatprep.subr.mxu0 0.0
      %592 = vmatpush2.msra.mxu0 0.0
      %593 = vmatprep.subr.mxu0 0.0
      %594 = vmatpush2.msra.mxu0 0.0
      %595 = vmatprep.subr.mxu0 0.0
      %596 = vmatpush2.msra.mxu0 0.0
      %597 = vmatprep.subr.mxu0 0.0
      %598 = vmatpush2.msra.mxu0 0.0
      %599 = vmatprep.subr.mxu0 0.0
      %600 = vmatpush2.msra.mxu0 0.0
      %601 = vmatprep.subr.mxu0 0.0
      %602 = vmatpush2.msra.mxu0 0.0
      %603 = vmatprep.subr.mxu0 0.0
      %604 = vmatpush2.msra.mxu0 0.0
      %605 = vmatprep.mubr.f32.mxu0 0.0
      %606 = vmatmul.mubr.f32.gmra.mxu0 %v530
      %v607 = vpop.f32.mrf.mxu0
      %v608 = vadd.f32 %v527, %v607
      %v609 = vpop.f32.mrf.mxu0
      %610 = vmatprep.mubr.f32.mxu0 0.0
      %611 = vmatmul.mubr.f32.gmra.mxu0 %v533
      %v612 = vpop.f32.mrf.mxu0
      %v613 = vadd.f32 %v527, %v612
      %v614 = vpop.f32.mrf.mxu0
      %615 = vmatprep.mubr.f32.mxu0 0.0
      %616 = vmatmul.mubr.f32.gmra.mxu0 %v536
      %v617 = vpop.f32.mrf.mxu0
      %v618 = vadd.f32 %v527, %v617
      %v619 = vpop.f32.mrf.mxu0
      %620 = vmatprep.mubr.f32.mxu0 0.0
      %621 = vmatmul.mubr.f32.gmra.mxu0 %v539
      %v622 = vpop.f32.mrf.mxu0
      %v623 = vadd.f32 %v527, %v622
      %v624 = vpop.f32.mrf.mxu0
      %625 = vdwg.mxu0
      %v626 = vsub.f32 0.0, %v608
      %v627 = vsub.f32 0.0, %v613
      %v628 = vsub.f32 0.0, %v618
      %v629 = vsub.f32 0.0, %v623
      %v630 = vmul.f32 %v626, 1.442695
      %v631 = vpow.pop %v630
      %v632 = vmul.f32 %v627, 1.442695
      %v633 = vpow.pop %v632
      %v634 = vmul.f32 %v628, 1.442695
      %v635 = vpow.pop %v634
      %v636 = vmul.f32 %v629, 1.442695
      %v637 = vpow.pop %v636
      %v638 = vadd.f32 %v631, 1.0
      %v639 = vadd.f32 %v633, 1.0
      %v640 = vadd.f32 %v635, 1.0
      %v641 = vadd.f32 %v637, 1.0
      %v642 = vrcp.pop %v638
      %v643 = vmul.f32 1.0, %v642
      %v644 = vrcp.pop %v639
      %v645 = vmul.f32 1.0, %v644
      %v646 = vrcp.pop %v640
      %v647 = vmul.f32 1.0, %v646
      %v648 = vrcp.pop %v641
      %v649 = vmul.f32 1.0, %v648
      %vm650 = vcmask 15360
      %651 = vst.msk [vmem:[%s280] sm:$0xff] %vm650, %v643
      %652 = vst.msk [vmem:[%s280 + $0x8] sm:$0xff] %vm650, %v645
      %653 = vst.msk [vmem:[%s280 + $0x10] sm:$0xff] %vm650, %v647
      %654 = vst.msk [vmem:[%s280 + $0x18] sm:$0xff] %vm650, %v649
      %s655 = smul.u32 4, %s18
      %p656 = scmp.lt.s32.totalorder %s655, 7
      %s657 = scalar_select %p656, %s655, 7
      %s658 = smul.addr %s657, 8
      %s659 = scalar_lea.vmem %s7, %s658
      // Predicated region
      $region49: #{tpu_custom_call.1} parent=47 // pred_check
        %p660 = pneg %p188
      $region50: #{tpu_custom_call.1} parent=47 // pred_check_branch
        %662 = sbr.rel (%p660) target = $region52
      $region51: #{tpu_custom_call.1} parent=47 // pred_region
        %s663 = smul.u32 4, %s18
      $region52: #{tpu_custom_call.1} parent=47 // pred_fallthru
        _
    $region48: #{tpu_custom_call.1} parent=5 // pred_fallthru
      _
    %p664 = scmp.le.s32.totalorder 2, %s13
    // Predicated region
    $region53: #{tpu_custom_call.1} parent=5 // pred_check
      %p665 = pneg %p664
    $region54: #{tpu_custom_call.1} parent=5 // pred_check_branch
      %667 = sbr.rel (%p665) target = $region56
    $region55: #{tpu_custom_call.1} parent=5 // pred_region
      %s668 = ssub.s32 %s13, 2
      // Predicated region
      $region57: #{tpu_custom_call.1} parent=55 // pred_check
        %p669 = pneg %p194
      $region58: #{tpu_custom_call.1} parent=55 // pred_check_branch
        %671 = sbr.rel (%p669) target = $region60
      $region59: #{tpu_custom_call.1} parent=55 // pred_region
        %s672 = smul.u32 4, %s19
        %p673 = scmp.lt.s32.totalorder %s672, 7
        %s674 = scalar_select %p673, %s672, 7
        %s675 = smul.addr %s674, 8
        %s676 = scalar_lea.vmem %s7, %s675
      $region60: #{tpu_custom_call.1} parent=55 // pred_fallthru
        _
    $region56: #{tpu_custom_call.1} parent=5 // pred_fallthru
      _
  $region6: #{tpu_custom_call.1} parent=0 // loop_footer
    %s17 = sadd.s32 1, %s13
  $region7: #{tpu_custom_call.1} parent=0 // loop_footer_branch
    %12 = sbr.rel target = $region3
  $region8: #{tpu_custom_call.1} parent=0 // loop_exit
    _

</llo_original>
